<compile_context>
chip_gen: v6e
topology: v6e:2x2x1
jax: 0.10.0
libtpu: 0.0.40
codegen_flags: <defaults>
</compile_context>

<pallas_src>
import functools

import numpy as np
import jax
import jax.numpy as jnp
from jax.experimental import pallas as pl
from jax.experimental.pallas import tpu as pltpu


# contract lhs dim 1 with rhs dim 1  ==  x @ W.T  (torch nn.Linear semantics)
_DN_XWT = (((1,), (1,)), ((), ()))


# ----------------------------------------------------------------------------
# Kernel 1: q/k/v linear projections (no bias).  Grid = (B,).
# Weights are the raw torch weights (untransposed, cast to bf16 once in the
# wrapper); the 1/sqrt(D) attention scale is folded into Q here (f32).
# ----------------------------------------------------------------------------
def _proj_kernel(q_ref, k_ref, v_ref, wq_ref, wk_ref, wv_ref,
                 qo_ref, ko_ref, vo_ref, *, inv_scale):
    q = jax.lax.dot_general(q_ref[0].astype(jnp.bfloat16), wq_ref[...],
                            _DN_XWT, preferred_element_type=jnp.float32)
    qo_ref[0] = (q * inv_scale).astype(qo_ref.dtype)
    k = jax.lax.dot_general(k_ref[0].astype(jnp.bfloat16), wk_ref[...],
                            _DN_XWT, preferred_element_type=jnp.float32)
    ko_ref[0] = k.astype(ko_ref.dtype)
    v = jax.lax.dot_general(v_ref[0].astype(jnp.bfloat16), wv_ref[...],
                            _DN_XWT, preferred_element_type=jnp.float32)
    vo_ref[0] = v.astype(vo_ref.dtype)


def qkv_proj(q, k, v, wq_bf16, wk_bf16, wv_bf16, inv_scale):
    B, L, F = q.shape
    seq_in = pl.BlockSpec((1, L, F), lambda b: (b, 0, 0))
    w_spec = pl.BlockSpec((F, F), lambda b: (0, 0))
    seq_out = pl.BlockSpec((1, L, F), lambda b: (b, 0, 0))
    return pl.pallas_call(
        functools.partial(_proj_kernel, inv_scale=inv_scale),
        grid=(B,),
        in_specs=[seq_in, seq_in, seq_in, w_spec, w_spec, w_spec],
        out_specs=(seq_out, seq_out, seq_out),
        out_shape=(jax.ShapeDtypeStruct((B, L, F), jnp.bfloat16),) * 3,
        compiler_params=pltpu.CompilerParams(dimension_semantics=("parallel",)),
    )(q, k, v, wq_bf16, wk_bf16, wv_bf16)


# ----------------------------------------------------------------------------
# Kernel 2: multi-head scaled-dot-product attention.  Grid = (B,): all heads
# of one batch row per step.  The per-head (L, D) results are written straight
# into their column slab of the (B, L, F) output, so the downstream fc kernel
# consumes the exact `permute(0,2,1,3).reshape(B,-1,F)` layout with no XLA
# transpose in between.  The head-summed attention map is accumulated
# un-transposed and transposed/scaled exactly once per batch.
# ----------------------------------------------------------------------------
def _attn_kernel(q_ref, k_ref, v_ref, x_ref, asum_ref, *, num_head):
    # refs: q/k/v (1, H, L, D) bf16 (Q already pre-scaled by 1/sqrt(D))
    L = asum_ref.shape[1]
    D = v_ref.shape[-1]
    attn_acc = jnp.zeros((L, L), jnp.float32)
    for h in range(num_head):                      # static unroll (H is small)
        q = q_ref[0, h]                            # (L, D) bf16
        k = k_ref[0, h]
        v = v_ref[0, h]
        # energy = q @ k.T without materializing a transpose of k
        energy = jax.lax.dot_general(q, k, _DN_XWT,
                                     preferred_element_type=jnp.float32)
        # TODO(synk): attn_mask branch (masked_fill with -inf) not implemented;
        # the call site uses attn_mask=None.
        energy = energy - jnp.max(energy, axis=-1, keepdims=True)
        p = jnp.exp(energy)
        attn = p * pl.reciprocal(jnp.sum(p, axis=-1, keepdims=True), approx=True)
        out_h = jnp.dot(attn.astype(v.dtype), v,
                        preferred_element_type=jnp.float32)      # (L, D) f32
        # write head h into its column slab of the concatenated output
        x_ref[0, :, h * D:(h + 1) * D] = out_h.astype(x_ref.dtype)
        attn_acc = attn_acc + attn
    # matches `attention.sum(dim=1).permute(0, 2, 1) / num_head`
    asum_ref[0] = jnp.transpose(attn_acc) * (1.0 / num_head)


def mha_core(Qh, Kh, Vh, num_head):
    B, H, L, D = Qh.shape
    F = H * D
    head_spec = pl.BlockSpec((1, H, L, D), lambda b: (b, 0, 0, 0))
    x_spec = pl.BlockSpec((1, L, F), lambda b: (b, 0, 0))
    asum_spec = pl.BlockSpec((1, L, L), lambda b: (b, 0, 0))
    return pl.pallas_call(
        functools.partial(_attn_kernel, num_head=num_head),
        grid=(B,),
        in_specs=[head_spec, head_spec, head_spec],
        out_specs=(x_spec, asum_spec),
        out_shape=(jax.ShapeDtypeStruct((B, L, F), jnp.float32),
                   jax.ShapeDtypeStruct((B, L, L), jnp.float32)),
        compiler_params=pltpu.CompilerParams(dimension_semantics=("parallel",)),
    )(Qh, Kh, Vh)


# ----------------------------------------------------------------------------
# Kernel 3: fc (no bias) + residual add + LayerNorm.  Grid = (B,).
# ----------------------------------------------------------------------------
def _out_kernel(x_ref, res_ref, wfc_ref, g_ref, b_ref, o_ref, *, eps):
    y = jax.lax.dot_general(x_ref[0].astype(jnp.bfloat16), wfc_ref[...],
                            _DN_XWT, preferred_element_type=jnp.float32)
    # TODO(synk): nn.Dropout omitted (identity at inference time).
    y = y + res_ref[0]
    mean = jnp.mean(y, axis=-1, keepdims=True)
    var = jnp.mean(y * y, axis=-1, keepdims=True) - mean * mean   # one-pass var
    centered = y - mean
    o_ref[0] = centered * jax.lax.rsqrt(var + eps) * g_ref[...] + b_ref[...]


def out_block(x, res, wfc_bf16, gamma2d, beta2d):
    B, L, F = x.shape
    seq_spec = pl.BlockSpec((1, L, F), lambda b: (b, 0, 0))
    w_spec = pl.BlockSpec((F, F), lambda b: (0, 0))
    vec_spec = pl.BlockSpec((1, F), lambda b: (0, 0))
    return pl.pallas_call(
        functools.partial(_out_kernel, eps=1e-5),
        grid=(B,),
        in_specs=[seq_spec, seq_spec, w_spec, vec_spec, vec_spec],
        out_specs=seq_spec,
        out_shape=jax.ShapeDtypeStruct((B, L, F), jnp.float32),
        compiler_params=pltpu.CompilerParams(dimension_semantics=("parallel",)),
    )(x, res, wfc_bf16, gamma2d, beta2d)


# ----------------------------------------------------------------------------
# Full forward.  Only free row-major reshapes happen outside the kernels.
# ----------------------------------------------------------------------------
def attention_forward(params, query, key, value, num_head):
    B, L, F = query.shape
    D = F // num_head
    assert D * num_head == F
    inv_scale = 1.0 / float(np.sqrt(D))

    # cast weights to bf16 once; never transposed (kernels contract dim 1)
    wq = params["wq"].astype(jnp.bfloat16)
    wk = params["wk"].astype(jnp.bfloat16)
    wv = params["wv"].astype(jnp.bfloat16)
    wfc = params["wfc"].astype(jnp.bfloat16)

    Q, K, V = qkv_proj(query, key, value, wq, wk, wv, inv_scale)

    # matches torch `.view(batch, num_head, -1, size_per_head)` (row-major,
    # no data movement in XLA)
    Qh = Q.reshape(B, num_head, -1, D)
    Kh = K.reshape(B, num_head, -1, D)
    Vh = V.reshape(B, num_head, -1, D)

    # x comes back already in the (B, L, F) concatenated-head layout
    x, attn_avg = mha_core(Qh, Kh, Vh, num_head)

    out = out_block(x, query, wfc,
                    params["gamma"][None, :], params["beta"][None, :])
    return out, attn_avg


# ----------------------------------------------------------------------------
# Pure-JAX reference (mirrors the PyTorch forward) for a sanity check
# ----------------------------------------------------------------------------
def reference_forward(params, query, key, value, num_head):
    B, L, F = query.shape
    D = F // num_head
    q = query @ params["wq"].T
    k = key @ params["wk"].T
    v = value @ params["wv"].T
    q = q.reshape(B, num_head, -1, D)
    k = k.reshape(B, num_head, -1, D)
    v = v.reshape(B, num_head, -1, D)
    energy = jnp.einsum("bhqd,bhkd->bhqk", q, k) / np.sqrt(D)
    attention = jax.nn.softmax(energy, axis=-1)
    x = jnp.einsum("bhqk,bhkd->bhqd", attention, v)
    x = jnp.transpose(x, (0, 2, 1, 3)).reshape(B, -1, F)
    attention = jnp.transpose(attention.sum(axis=1), (0, 2, 1)) / num_head
    x = x @ params["wfc"].T
    x = x + query
    mean = x.mean(-1, keepdims=True)
    var = ((x - mean) ** 2).mean(-1, keepdims=True)
    x = (x - mean) / jnp.sqrt(var + 1e-5) * params["gamma"] + params["beta"]
    return x, attention


if __name__ == "__main__":
    B, L, F, H = 2, 8, 32, 4
    root = jax.random.PRNGKey(0)
    ks = jax.random.split(root, 8)
    bound = 1.0 / np.sqrt(F)
    params = dict(
        wq=jax.random.uniform(ks[0], (F, F), jnp.float32, -bound, bound),
        wk=jax.random.uniform(ks[1], (F, F), jnp.float32, -bound, bound),
        wv=jax.random.uniform(ks[2], (F, F), jnp.float32, -bound, bound),
        wfc=jax.random.uniform(ks[3], (F, F), jnp.float32, -bound, bound),
        gamma=jnp.ones((F,), jnp.float32),   # LayerNorm default init
        beta=jnp.zeros((F,), jnp.float32),
    )
    query = jax.random.normal(ks[4], (B, L, F), jnp.float32)
    key_in = jax.random.normal(ks[5], (B, L, F), jnp.float32)
    value = jax.random.normal(ks[6], (B, L, F), jnp.float32)

    out_x, out_attn = attention_forward(params, query, key_in, value, H)
    jax.block_until_ready((out_x, out_attn))

    ref_x, ref_attn = reference_forward(params, query, key_in, value, H)
    np.testing.assert_allclose(np.asarray(out_x), np.asarray(ref_x), rtol=1e-2, atol=1e-2)
    np.testing.assert_allclose(np.asarray(out_attn), np.asarray(ref_attn), rtol=1e-2, atol=1e-2)

    print("KERNEL_OK")
</pallas_src>

<mosaic_0001>
module attributes {stable_mosaic.version = 11 : i64} {
  func.func @_proj_kernel(%arg0: i32, %arg1: memref<1x8x32xf32, #tpu.memory_space<vmem>>, %arg2: memref<1x8x32xf32, #tpu.memory_space<vmem>>, %arg3: memref<1x8x32xf32, #tpu.memory_space<vmem>>, %arg4: memref<32x32xbf16, #tpu.memory_space<vmem>>, %arg5: memref<32x32xbf16, #tpu.memory_space<vmem>>, %arg6: memref<32x32xbf16, #tpu.memory_space<vmem>>, %arg7: memref<1x8x32xbf16, #tpu.memory_space<vmem>>, %arg8: memref<1x8x32xbf16, #tpu.memory_space<vmem>>, %arg9: memref<1x8x32xbf16, #tpu.memory_space<vmem>>) attributes {dimension_semantics = [#tpu.dimension_semantics<parallel>], iteration_bounds = array<i64: 2>, scalar_prefetch = 0 : i64, scratch_operands = 0 : i64, tpu.core_type = #tpu.core_type<tc>, window_params = [{transform_indices = @transform_0, window_bounds = array<i64: 1, 8, 32>}, {transform_indices = @transform_1, window_bounds = array<i64: 1, 8, 32>}, {transform_indices = @transform_2, window_bounds = array<i64: 1, 8, 32>}, {pipeline_mode = #tpu.pipeline_mode<synchronous>, transform_indices = @transform_3, window_bounds = array<i64: 32, 32>}, {pipeline_mode = #tpu.pipeline_mode<synchronous>, transform_indices = @transform_4, window_bounds = array<i64: 32, 32>}, {pipeline_mode = #tpu.pipeline_mode<synchronous>, transform_indices = @transform_5, window_bounds = array<i64: 32, 32>}, {transform_indices = @transform_6, window_bounds = array<i64: 1, 8, 32>}, {transform_indices = @transform_7, window_bounds = array<i64: 1, 8, 32>}, {transform_indices = @transform_8, window_bounds = array<i64: 1, 8, 32>}]} {
    %c0 = arith.constant 0 : index
    %c0_0 = arith.constant 0 : index
    %c0_1 = arith.constant 0 : index
    %0 = vector.load %arg1[%c0, %c0_0, %c0_1] : memref<1x8x32xf32, #tpu.memory_space<vmem>>, vector<1x8x32xf32>
    %1 = vector.shape_cast %0 : vector<1x8x32xf32> to vector<8x32xf32>
    %2 = arith.truncf %1 : vector<8x32xf32> to vector<8x32xbf16>
    %c0_2 = arith.constant 0 : index
    %c0_3 = arith.constant 0 : index
    %3 = vector.load %arg4[%c0_2, %c0_3] : memref<32x32xbf16, #tpu.memory_space<vmem>>, vector<32x32xbf16>
    %cst = arith.constant dense<0.000000e+00> : vector<8x32xf32>
    %4 = tpu.matmul %2, %3, %cst {dimension_numbers = #tpu.dot_dimension_numbers<[1], [1], [0], [0], [0, 0, 1, 0], [], []>} : vector<8x32xbf16>, vector<32x32xbf16>, vector<8x32xf32> -> vector<8x32xf32>
    %cst_4 = arith.constant 0.353553385 : f32
    %5 = vector.broadcast %cst_4 : f32 to vector<8x32xf32>
    %6 = arith.mulf %4, %5 : vector<8x32xf32>
    %7 = arith.truncf %6 : vector<8x32xf32> to vector<8x32xbf16>
    %c0_5 = arith.constant 0 : index
    %c0_6 = arith.constant 0 : index
    %c0_7 = arith.constant 0 : index
    %8 = vector.load %arg7[%c0_5, %c0_6, %c0_7] : memref<1x8x32xbf16, #tpu.memory_space<vmem>>, vector<1x8x32xbf16>
    %9 = vector.shape_cast %8 : vector<1x8x32xbf16> to vector<8x32xbf16>
    %10 = vector.shape_cast %7 : vector<8x32xbf16> to vector<1x8x32xbf16>
    tpu.vector_store %arg7[%c0_5, %c0_6, %c0_7], %10 {strides = array<i32>} : memref<1x8x32xbf16, #tpu.memory_space<vmem>>, vector<1x8x32xbf16>,
    %c0_8 = arith.constant 0 : index
    %c0_9 = arith.constant 0 : index
    %c0_10 = arith.constant 0 : index
    %11 = vector.load %arg2[%c0_8, %c0_9, %c0_10] : memref<1x8x32xf32, #tpu.memory_space<vmem>>, vector<1x8x32xf32>
    %12 = vector.shape_cast %11 : vector<1x8x32xf32> to vector<8x32xf32>
    %13 = arith.truncf %12 : vector<8x32xf32> to vector<8x32xbf16>
    %c0_11 = arith.constant 0 : index
    %c0_12 = arith.constant 0 : index
    %14 = vector.load %arg5[%c0_11, %c0_12] : memref<32x32xbf16, #tpu.memory_space<vmem>>, vector<32x32xbf16>
    %cst_13 = arith.constant dense<0.000000e+00> : vector<8x32xf32>
    %15 = tpu.matmul %13, %14, %cst_13 {dimension_numbers = #tpu.dot_dimension_numbers<[1], [1], [0], [0], [0, 0, 1, 0], [], []>} : vector<8x32xbf16>, vector<32x32xbf16>, vector<8x32xf32> -> vector<8x32xf32>
    %16 = arith.truncf %15 : vector<8x32xf32> to vector<8x32xbf16>
    %c0_14 = arith.constant 0 : index
    %c0_15 = arith.constant 0 : index
    %c0_16 = arith.constant 0 : index
    %17 = vector.load %arg8[%c0_14, %c0_15, %c0_16] : memref<1x8x32xbf16, #tpu.memory_space<vmem>>, vector<1x8x32xbf16>
    %18 = vector.shape_cast %17 : vector<1x8x32xbf16> to vector<8x32xbf16>
    %19 = vector.shape_cast %16 : vector<8x32xbf16> to vector<1x8x32xbf16>
    tpu.vector_store %arg8[%c0_14, %c0_15, %c0_16], %19 {strides = array<i32>} : memref<1x8x32xbf16, #tpu.memory_space<vmem>>, vector<1x8x32xbf16>,
    %c0_17 = arith.constant 0 : index
    %c0_18 = arith.constant 0 : index
    %c0_19 = arith.constant 0 : index
    %20 = vector.load %arg3[%c0_17, %c0_18, %c0_19] : memref<1x8x32xf32, #tpu.memory_space<vmem>>, vector<1x8x32xf32>
    %21 = vector.shape_cast %20 : vector<1x8x32xf32> to vector<8x32xf32>
    %22 = arith.truncf %21 : vector<8x32xf32> to vector<8x32xbf16>
    %c0_20 = arith.constant 0 : index
    %c0_21 = arith.constant 0 : index
    %23 = vector.load %arg6[%c0_20, %c0_21] : memref<32x32xbf16, #tpu.memory_space<vmem>>, vector<32x32xbf16>
    %cst_22 = arith.constant dense<0.000000e+00> : vector<8x32xf32>
    %24 = tpu.matmul %22, %23, %cst_22 {dimension_numbers = #tpu.dot_dimension_numbers<[1], [1], [0], [0], [0, 0, 1, 0], [], []>} : vector<8x32xbf16>, vector<32x32xbf16>, vector<8x32xf32> -> vector<8x32xf32>
    %25 = arith.truncf %24 : vector<8x32xf32> to vector<8x32xbf16>
    %c0_23 = arith.constant 0 : index
    %c0_24 = arith.constant 0 : index
    %c0_25 = arith.constant 0 : index
    %26 = vector.load %arg9[%c0_23, %c0_24, %c0_25] : memref<1x8x32xbf16, #tpu.memory_space<vmem>>, vector<1x8x32xbf16>
    %27 = vector.shape_cast %26 : vector<1x8x32xbf16> to vector<8x32xbf16>
    %28 = vector.shape_cast %25 : vector<8x32xbf16> to vector<1x8x32xbf16>
    tpu.vector_store %arg9[%c0_23, %c0_24, %c0_25], %28 {strides = array<i32>} : memref<1x8x32xbf16, #tpu.memory_space<vmem>>, vector<1x8x32xbf16>,
    return
  }
  func.func @transform_0(%arg0: i32) -> (i32, i32, i32) {
    %c0_i32 = arith.constant 0 : i32
    %c0_i32_0 = arith.constant 0 : i32
    %c0_i32_1 = arith.constant 0 : i32
    return %arg0, %c0_i32, %c0_i32_0 : i32, i32, i32
  }
  func.func @transform_1(%arg0: i32) -> (i32, i32, i32) {
    %c0_i32 = arith.constant 0 : i32
    %c0_i32_0 = arith.constant 0 : i32
    %c0_i32_1 = arith.constant 0 : i32
    return %arg0, %c0_i32, %c0_i32_0 : i32, i32, i32
  }
  func.func @transform_2(%arg0: i32) -> (i32, i32, i32) {
    %c0_i32 = arith.constant 0 : i32
    %c0_i32_0 = arith.constant 0 : i32
    %c0_i32_1 = arith.constant 0 : i32
    return %arg0, %c0_i32, %c0_i32_0 : i32, i32, i32
  }
  func.func @transform_3(%arg0: i32) -> (i32, i32) {
    %c0_i32 = arith.constant 0 : i32
    %c0_i32_0 = arith.constant 0 : i32
    %c0_i32_1 = arith.constant 0 : i32
    return %c0_i32, %c0_i32_0 : i32, i32
  }
  func.func @transform_4(%arg0: i32) -> (i32, i32) {
    %c0_i32 = arith.constant 0 : i32
    %c0_i32_0 = arith.constant 0 : i32
    %c0_i32_1 = arith.constant 0 : i32
    return %c0_i32, %c0_i32_0 : i32, i32
  }
  func.func @transform_5(%arg0: i32) -> (i32, i32) {
    %c0_i32 = arith.constant 0 : i32
    %c0_i32_0 = arith.constant 0 : i32
    %c0_i32_1 = arith.constant 0 : i32
    return %c0_i32, %c0_i32_0 : i32, i32
  }
  func.func @transform_6(%arg0: i32) -> (i32, i32, i32) {
    %c0_i32 = arith.constant 0 : i32
    %c0_i32_0 = arith.constant 0 : i32
    %c0_i32_1 = arith.constant 0 : i32
    return %arg0, %c0_i32, %c0_i32_0 : i32, i32, i32
  }
  func.func @transform_7(%arg0: i32) -> (i32, i32, i32) {
    %c0_i32 = arith.constant 0 : i32
    %c0_i32_0 = arith.constant 0 : i32
    %c0_i32_1 = arith.constant 0 : i32
    return %arg0, %c0_i32, %c0_i32_0 : i32, i32, i32
  }
  func.func @transform_8(%arg0: i32) -> (i32, i32, i32) {
    %c0_i32 = arith.constant 0 : i32
    %c0_i32_0 = arith.constant 0 : i32
    %c0_i32_1 = arith.constant 0 : i32
    return %arg0, %c0_i32, %c0_i32_0 : i32, i32, i32
  }
}

</mosaic_0001>

<llo_original>
// kernel: tpu_custom_call.1
$region0: #{tpu_custom_call.1}
  #allocation0 [shape = 'u32[]', space=smem, size = 0x4, offset = 0x4, fixed_abs, tag = 'smem constant byte address 0x4 - core index']
  #allocation1 [shape = 'u32[144,128]{1,0:T(1,128)}', space=vmem, size = 0x12000, scoped, tag = 'internal scratch']
  %s0 = inlined_call_operand.hbm [shape: f32[2,8,32], index: 0, kind: input, shape index: {}]
  %s1 = inlined_call_operand.hbm [shape: f32[2,8,32], index: 1, kind: input, shape index: {}]
  %s2 = inlined_call_operand.hbm [shape: f32[2,8,32], index: 2, kind: input, shape index: {}]
  %s3 = inlined_call_operand.hbm [shape: bf16[32,32], index: 3, kind: input, shape index: {}]
  %s4 = inlined_call_operand.hbm [shape: bf16[32,32], index: 4, kind: input, shape index: {}]
  %s5 = inlined_call_operand.hbm [shape: bf16[32,32], index: 5, kind: input, shape index: {}]
  %s6 = inlined_call_operand.hbm [shape: bf16[2,8,32], index: 6, kind: output, shape index: {0}]
  %s7 = inlined_call_operand.hbm [shape: bf16[2,8,32], index: 7, kind: output, shape index: {1}]
  %s8 = inlined_call_operand.hbm [shape: bf16[2,8,32], index: 8, kind: output, shape index: {2}]
  %9 = xla_tuple %s6, %s7, %s8
  %s10 = sld [smem:[#allocation0]]
  $region97: #{tpu_custom_call.1} parent=0
    _
  %s12 = ssub.s32 1, %s10
  %s13 = scalar_select 0, %s12, %s10
  $region1: #{tpu_custom_call.1} parent=0
    #allocation2 [shape = 'u8[8192]{0}', space=vmem, size = 0x2000, scoped, tag = 'input window, operand 0']
    #allocation3 [shape = 's32[2]{0}', space=sflag, size = 0x8, scoped, tag = 'scoped memory for tpu_custom_call.1']
    #allocation4 [shape = 's32[2]{0}', space=sflag, size = 0x8, scoped, tag = 'scoped memory for tpu_custom_call.1']
    #allocation5 [shape = 'u8[8192]{0}', space=vmem, size = 0x2000, scoped, tag = 'input window, operand 1']
    #allocation6 [shape = 's32[2]{0}', space=sflag, size = 0x8, scoped, tag = 'scoped memory for tpu_custom_call.1']
    #allocation7 [shape = 'u8[8192]{0}', space=vmem, size = 0x2000, scoped, tag = 'input window, operand 2']
    #allocation8 [shape = 'u8[8192]{0}', space=vmem, size = 0x2000, scoped, tag = 'input window, operand 3, single buffered']
    #allocation9 [shape = 's32[1]{0}', space=sflag, size = 0x4, scoped, tag = 'scoped memory for tpu_custom_call.1']
    #allocation10 [shape = 'u8[8192]{0}', space=vmem, size = 0x2000, scoped, tag = 'input window, operand 4, single buffered']
    #allocation11 [shape = 'u8[8192]{0}', space=vmem, size = 0x2000, scoped, tag = 'input window, operand 5, single buffered']
    #allocation12 [shape = 's32[1]{0}', space=sflag, size = 0x4, scoped, tag = 'scoped memory for tpu_custom_call.1']
    #allocation13 [shape = 'u8[4096]{0}', space=vmem, size = 0x1000, scoped, tag = 'output window, operand 0']
    #allocation14 [shape = 'u8[4096]{0}', space=vmem, size = 0x1000, scoped, tag = 'output window, operand 1']
    #allocation15 [shape = 's32[2]{0}', space=sflag, size = 0x8, scoped, tag = 'scoped memory for tpu_custom_call.1']
    #allocation16 [shape = 'u8[4096]{0}', space=vmem, size = 0x1000, scoped, tag = 'output window, operand 2']
    %14 = vsyncpa [#allocation3], 0
    %s15 = scalar_lea.sflag [#allocation3], 1
    %16 = vsyncpa %s15, 0
    %17 = vsyncpa [#allocation6], 0
    %s18 = scalar_lea.sflag [#allocation6], 1
    %19 = vsyncpa %s18, 0
    %20 = vsyncpa [#allocation9], 0
    %21 = vsyncpa [#allocation12], 0
    %22 = vsyncpa [#allocation4], 0
    %s23 = scalar_lea.sflag [#allocation4], 1
    %24 = vsyncpa %s23, 0
    %25 = vsyncpa [#allocation15], 0
    %s26 = scalar_lea.sflag [#allocation15], 1
    %27 = vsyncpa %s26, 0
    loop: start=0, step=1, limit=4
    $region2: #{tpu_custom_call.1} parent=1 // loop_pre_header
      _
    $region3: #{tpu_custom_call.1} parent=1 // loop_header
      %s29 = sphi 0, %s33
      %p30 = scmp.ge.s32.totalorder %s29, 4
      %s39 = sphi 0, %s41
      %s42 = sphi 0, %s39
      %s43 = sphi 0, %s42
      %s59 = sphi 0, %s43
      %s65 = sphi 0, %s67
      %s68 = sphi 0, %s65
      %s69 = sphi 0, %s68
      %s85 = sphi 0, %s69
      %s91 = sphi 0, %s93
      %s94 = sphi 0, %s91
      %s95 = sphi 0, %s94
      %s111 = sphi 0, %s95
      %s115 = sphi 0, %s115
      %s117 = sphi 0, %s115
      %s118 = sphi 0, %s117
      %s132 = sphi 0, %s118
      %s136 = sphi 0, %s136
      %s138 = sphi 0, %s136
      %s139 = sphi 0, %s138
      %s153 = sphi 0, %s139
      %s157 = sphi 0, %s157
      %s159 = sphi 0, %s157
      %s160 = sphi 0, %s159
      %s174 = sphi 0, %s160
      %s180 = sphi 0, %s182
      %s183 = sphi 0, %s180
      %s184 = sphi 0, %s183
      %s200 = sphi 0, %s184
      %s206 = sphi 0, %s208
      %s209 = sphi 0, %s206
      %s210 = sphi 0, %s209
      %s226 = sphi 0, %s210
      %s232 = sphi 0, %s234
      %s235 = sphi 0, %s232
      %s236 = sphi 0, %s235
      %s252 = sphi 0, %s236
    $region4: #{tpu_custom_call.1} parent=1 // loop_header_branch
      %32 = sbr.rel (%p30) target = $region8
    $region5: #{tpu_custom_call.1} parent=1 // loop_body
      %s34 = ssub.s32 %s29, 1
      %s35 = ssub.s32 %s29, 2
      %s36 = sadd.s32 %s29, 1
      %s37 = ssub.s32 %s29, %s36
      %p38 = scmp.eq.s32.totalorder %s37, 0
      %s40 = sadd.s32 %s39, 1
      %s41 = scalar_select %p38, %s39, %s40
      %p44 = pneg %p38
      %p45 = scmp.eq.s32.totalorder %s29, 1
      %p46 = por %p44, %p45
      %p47 = scmp.ne.s32.totalorder %s39, %s42
      %p48 = scmp.eq.s32.totalorder %s29, 0
      %p49 = por %p47, %p48
      %p50 = scmp.ne.s32.totalorder %s39, %s42
      %p51 = scmp.eq.s32.totalorder %s34, 1
      %p52 = por %p50, %p51
      %p53 = scmp.ne.s32.totalorder %s42, %s43
      %p54 = scmp.eq.s32.totalorder %s34, 0
      %p55 = por %p53, %p54
      %p56 = scmp.ne.s32.totalorder %s42, %s43
      %p57 = scmp.eq.s32.totalorder %s35, 1
      %p58 = por %p56, %p57
      %p60 = scmp.ne.s32.totalorder %s43, %s59
      %p61 = scmp.eq.s32.totalorder %s35, 0
      %p62 = por %p60, %p61
      %s63 = ssub.s32 %s29, %s36
      %p64 = scmp.eq.s32.totalorder %s63, 0
      %s66 = sadd.s32 %s65, 1
      %s67 = scalar_select %p64, %s65, %s66
      %p70 = pneg %p64
      %p71 = scmp.eq.s32.totalorder %s29, 1
      %p72 = por %p70, %p71
      %p73 = scmp.ne.s32.totalorder %s65, %s68
      %p74 = scmp.eq.s32.totalorder %s29, 0
      %p75 = por %p73, %p74
      %p76 = scmp.ne.s32.totalorder %s65, %s68
      %p77 = scmp.eq.s32.totalorder %s34, 1
      %p78 = por %p76, %p77
      %p79 = scmp.ne.s32.totalorder %s68, %s69
      %p80 = scmp.eq.s32.totalorder %s34, 0
      %p81 = por %p79, %p80
      %p82 = scmp.ne.s32.totalorder %s68, %s69
      %p83 = scmp.eq.s32.totalorder %s35, 1
      %p84 = por %p82, %p83
      %p86 = scmp.ne.s32.totalorder %s69, %s85
      %p87 = scmp.eq.s32.totalorder %s35, 0
      %p88 = por %p86, %p87
      %s89 = ssub.s32 %s29, %s36
      %p90 = scmp.eq.s32.totalorder %s89, 0
      %s92 = sadd.s32 %s91, 1
      %s93 = scalar_select %p90, %s91, %s92
      %p96 = pneg %p90
      %p97 = scmp.eq.s32.totalorder %s29, 1
      %p98 = por %p96, %p97
      %p99 = scmp.ne.s32.totalorder %s91, %s94
      %p100 = scmp.eq.s32.totalorder %s29, 0
      %p101 = por %p99, %p100
      %p102 = scmp.ne.s32.totalorder %s91, %s94
      %p103 = scmp.eq.s32.totalorder %s34, 1
      %p104 = por %p102, %p103
      %p105 = scmp.ne.s32.totalorder %s94, %s95
      %p106 = scmp.eq.s32.totalorder %s34, 0
      %p107 = por %p105, %p106
      %p108 = scmp.ne.s32.totalorder %s94, %s95
      %p109 = scmp.eq.s32.totalorder %s35, 1
      %p110 = por %p108, %p109
      %p112 = scmp.ne.s32.totalorder %s95, %s111
      %p113 = scmp.eq.s32.totalorder %s35, 0
      %p114 = por %p112, %p113
      %s116 = sadd.s32 %s115, 1
      %p119 = scmp.eq.s32.totalorder %s29, 1
      %p120 = scmp.ne.s32.totalorder %s115, %s117
      %p121 = scmp.eq.s32.totalorder %s29, 0
      %p122 = por %p120, %p121
      %p123 = scmp.ne.s32.totalorder %s115, %s117
      %p124 = scmp.eq.s32.totalorder %s34, 1
      %p125 = por %p123, %p124
      %p126 = scmp.ne.s32.totalorder %s117, %s118
      %p127 = scmp.eq.s32.totalorder %s34, 0
      %p128 = por %p126, %p127
      %p129 = scmp.ne.s32.totalorder %s117, %s118
      %p130 = scmp.eq.s32.totalorder %s35, 1
      %p131 = por %p129, %p130
      %p133 = scmp.ne.s32.totalorder %s118, %s132
      %p134 = scmp.eq.s32.totalorder %s35, 0
      %p135 = por %p133, %p134
      %s137 = sadd.s32 %s136, 1
      %p140 = scmp.eq.s32.totalorder %s29, 1
      %p141 = scmp.ne.s32.totalorder %s136, %s138
      %p142 = scmp.eq.s32.totalorder %s29, 0
      %p143 = por %p141, %p142
      %p144 = scmp.ne.s32.totalorder %s136, %s138
      %p145 = scmp.eq.s32.totalorder %s34, 1
      %p146 = por %p144, %p145
      %p147 = scmp.ne.s32.totalorder %s138, %s139
      %p148 = scmp.eq.s32.totalorder %s34, 0
      %p149 = por %p147, %p148
      %p150 = scmp.ne.s32.totalorder %s138, %s139
      %p151 = scmp.eq.s32.totalorder %s35, 1
      %p152 = por %p150, %p151
      %p154 = scmp.ne.s32.totalorder %s139, %s153
      %p155 = scmp.eq.s32.totalorder %s35, 0
      %p156 = por %p154, %p155
      %s158 = sadd.s32 %s157, 1
      %p161 = scmp.eq.s32.totalorder %s29, 1
      %p162 = scmp.ne.s32.totalorder %s157, %s159
      %p163 = scmp.eq.s32.totalorder %s29, 0
      %p164 = por %p162, %p163
      %p165 = scmp.ne.s32.totalorder %s157, %s159
      %p166 = scmp.eq.s32.totalorder %s34, 1
      %p167 = por %p165, %p166
      %p168 = scmp.ne.s32.totalorder %s159, %s160
      %p169 = scmp.eq.s32.totalorder %s34, 0
      %p170 = por %p168, %p169
      %p171 = scmp.ne.s32.totalorder %s159, %s160
      %p172 = scmp.eq.s32.totalorder %s35, 1
      %p173 = por %p171, %p172
      %p175 = scmp.ne.s32.totalorder %s160, %s174
      %p176 = scmp.eq.s32.totalorder %s35, 0
      %p177 = por %p175, %p176
      %s178 = ssub.s32 %s29, %s36
      %p179 = scmp.eq.s32.totalorder %s178, 0
      %s181 = sadd.s32 %s180, 1
      %s182 = scalar_select %p179, %s180, %s181
      %p185 = pneg %p179
      %p186 = scmp.eq.s32.totalorder %s29, 1
      %p187 = por %p185, %p186
      %p188 = scmp.ne.s32.totalorder %s180, %s183
      %p189 = scmp.eq.s32.totalorder %s29, 0
      %p190 = por %p188, %p189
      %p191 = scmp.ne.s32.totalorder %s180, %s183
      %p192 = scmp.eq.s32.totalorder %s34, 1
      %p193 = por %p191, %p192
      %p194 = scmp.ne.s32.totalorder %s183, %s184
      %p195 = scmp.eq.s32.totalorder %s34, 0
      %p196 = por %p194, %p195
      %p197 = scmp.ne.s32.totalorder %s183, %s184
      %p198 = scmp.eq.s32.totalorder %s35, 1
      %p199 = por %p197, %p198
      %p201 = scmp.ne.s32.totalorder %s184, %s200
      %p202 = scmp.eq.s32.totalorder %s35, 0
      %p203 = por %p201, %p202
      %s204 = ssub.s32 %s29, %s36
      %p205 = scmp.eq.s32.totalorder %s204, 0
      %s207 = sadd.s32 %s206, 1
      %s208 = scalar_select %p205, %s206, %s207
      %p211 = pneg %p205
      %p212 = scmp.eq.s32.totalorder %s29, 1
      %p213 = por %p211, %p212
      %p214 = scmp.ne.s32.totalorder %s206, %s209
      %p215 = scmp.eq.s32.totalorder %s29, 0
      %p216 = por %p214, %p215
      %p217 = scmp.ne.s32.totalorder %s206, %s209
      %p218 = scmp.eq.s32.totalorder %s34, 1
      %p219 = por %p217, %p218
      %p220 = scmp.ne.s32.totalorder %s209, %s210
      %p221 = scmp.eq.s32.totalorder %s34, 0
      %p222 = por %p220, %p221
      %p223 = scmp.ne.s32.totalorder %s209, %s210
      %p224 = scmp.eq.s32.totalorder %s35, 1
      %p225 = por %p223, %p224
      %p227 = scmp.ne.s32.totalorder %s210, %s226
      %p228 = scmp.eq.s32.totalorder %s35, 0
      %p229 = por %p227, %p228
      %s230 = ssub.s32 %s29, %s36
      %p231 = scmp.eq.s32.totalorder %s230, 0
      %s233 = sadd.s32 %s232, 1
      %s234 = scalar_select %p231, %s232, %s233
      %p237 = pneg %p231
      %p238 = scmp.eq.s32.totalorder %s29, 1
      %p239 = por %p237, %p238
      %p240 = scmp.ne.s32.totalorder %s232, %s235
      %p241 = scmp.eq.s32.totalorder %s29, 0
      %p242 = por %p240, %p241
      %p243 = scmp.ne.s32.totalorder %s232, %s235
      %p244 = scmp.eq.s32.totalorder %s34, 1
      %p245 = por %p243, %p244
      %p246 = scmp.ne.s32.totalorder %s235, %s236
      %p247 = scmp.eq.s32.totalorder %s34, 0
      %p248 = por %p246, %p247
      %p249 = scmp.ne.s32.totalorder %s235, %s236
      %p250 = scmp.eq.s32.totalorder %s35, 1
      %p251 = por %p249, %p250
      %p253 = scmp.ne.s32.totalorder %s236, %s252
      %p254 = scmp.eq.s32.totalorder %s35, 0
      %p255 = por %p253, %p254
      %p256 = scmp.le.s32.totalorder 1, %s29
      %p257 = scmp.lt.s32.totalorder %s29, 3
      %p258 = pnand %p256, %p257
      %p259 = pneg %p258
      // Predicated region
      $region9: #{tpu_custom_call.1} parent=5 // pred_check
        _
      $region10: #{tpu_custom_call.1} parent=5 // pred_check_branch
        %261 = sbr.rel (%p258) target = $region12
      $region11: #{tpu_custom_call.1} parent=5 // pred_region
        %s262 = ssub.s32 %s29, 1
        // Predicated region
        $region13: #{tpu_custom_call.1} parent=11 // pred_check
          %p263 = pneg %p128
        $region14: #{tpu_custom_call.1} parent=11 // pred_check_branch
          %265 = sbr.rel (%p263) target = $region16
        $region15: #{tpu_custom_call.1} parent=11 // pred_region
          %s267 = ssub.s32 256, 256
          %268 = vsyncadd [#allocation9], %s267
          %s269 = sshll.u32 [#allocation8], 4
          %s270 = int_to_ptr.vmem [resolvable:$true] %s269
          %275 = dma.hbm_to_vmem [thread:$0]  %s3, 256, %s270, [#allocation9], 64, 64, 4
        $region16: #{tpu_custom_call.1} parent=11 // pred_fallthru
          _
        // Predicated region
        $region17: #{tpu_custom_call.1} parent=11 // pred_check
          %p276 = pneg %p149
        $region18: #{tpu_custom_call.1} parent=11 // pred_check_branch
          %278 = sbr.rel (%p276) target = $region20
        $region19: #{tpu_custom_call.1} parent=11 // pred_region
          %s280 = ssub.s32 256, 256
          %281 = vsyncadd [#allocation9], %s280
          %s282 = sshll.u32 [#allocation10], 4
          %s283 = int_to_ptr.vmem [resolvable:$true] %s282
          %288 = dma.hbm_to_vmem [thread:$0]  %s4, 256, %s283, [#allocation9], 64, 64, 4
        $region20: #{tpu_custom_call.1} parent=11 // pred_fallthru
          _
        // Predicated region
        $region21: #{tpu_custom_call.1} parent=11 // pred_check
          %p289 = pneg %p170
        $region22: #{tpu_custom_call.1} parent=11 // pred_check_branch
          %291 = sbr.rel (%p289) target = $region24
        $region23: #{tpu_custom_call.1} parent=11 // pred_region
          %s293 = ssub.s32 256, 256
          %294 = vsyncadd [#allocation12], %s293
          %s295 = sshll.u32 [#allocation11], 4
          %s296 = int_to_ptr.vmem [resolvable:$true] %s295
          %301 = dma.hbm_to_vmem [thread:$0]  %s5, 256, %s296, [#allocation12], 64, 64, 4
        $region24: #{tpu_custom_call.1} parent=11 // pred_fallthru
          _
      $region12: #{tpu_custom_call.1} parent=5 // pred_fallthru
        _
      %p302 = scmp.lt.s32.totalorder %s29, 2
      // Predicated region
      $region25: #{tpu_custom_call.1} parent=5 // pred_check
        %p303 = pneg %p302
      $region26: #{tpu_custom_call.1} parent=5 // pred_check_branch
        %305 = sbr.rel (%p303) target = $region28
      $region27: #{tpu_custom_call.1} parent=5 // pred_region
        // Predicated region
        $region29: #{tpu_custom_call.1} parent=27 // pred_check
          %p306 = pneg %p49
        $region30: #{tpu_custom_call.1} parent=27 // pred_check_branch
          %308 = sbr.rel (%p306) target = $region32
        $region31: #{tpu_custom_call.1} parent=27 // pred_region
          %s309 = sand.u32 %s39, 1
          %s310 = scalar_lea.sflag [#allocation3], %s309
          %s311 = sand.u32 %s39, 1
          %s312 = smul.addr %s311, 8
          %s313 = scalar_lea.vmem [#allocation2], %s312
          %s315 = ssub.s32 128, 128
          %316 = vsyncadd %s310, %s315
          %s317 = smul.addr %s29, 128
          %s318 = scalar_lea.hbm %s0, %s317
          %s320 = sshll.u32 %s313, 4
          %s321 = int_to_ptr.vmem [resolvable:$true] %s320
          %323 = dma.hbm_to_vmem [thread:$0]  %s318, 128, %s321, %s310
        $region32: #{tpu_custom_call.1} parent=27 // pred_fallthru
          _
        // Predicated region
        $region33: #{tpu_custom_call.1} parent=27 // pred_check
          %p324 = pneg %p75
        $region34: #{tpu_custom_call.1} parent=27 // pred_check_branch
          %326 = sbr.rel (%p324) target = $region36
        $region35: #{tpu_custom_call.1} parent=27 // pred_region
          %s327 = sand.u32 %s29, 1
          %s328 = scalar_lea.sflag [#allocation6], %s327
          %s329 = sand.u32 %s65, 1
          %s330 = smul.addr %s329, 8
          %s331 = scalar_lea.vmem [#allocation5], %s330
          %s333 = ssub.s32 128, 128
          %334 = vsyncadd %s328, %s333
          %s335 = smul.addr %s29, 128
          %s336 = scalar_lea.hbm %s1, %s335
          %s338 = sshll.u32 %s331, 4
          %s339 = int_to_ptr.vmem [resolvable:$true] %s338
          %341 = dma.hbm_to_vmem [thread:$0]  %s336, 128, %s339, %s328
        $region36: #{tpu_custom_call.1} parent=27 // pred_fallthru
          _
        // Predicated region
        $region37: #{tpu_custom_call.1} parent=27 // pred_check
          %p342 = pneg %p101
        $region38: #{tpu_custom_call.1} parent=27 // pred_check_branch
          %344 = sbr.rel (%p342) target = $region40
        $region39: #{tpu_custom_call.1} parent=27 // pred_region
          %s345 = sand.u32 %s29, 1
          %s346 = scalar_lea.sflag [#allocation6], %s345
          %s347 = sand.u32 %s91, 1
          %s348 = smul.addr %s347, 8
          %s349 = scalar_lea.vmem [#allocation7], %s348
          %s351 = ssub.s32 128, 128
          %352 = vsyncadd %s346, %s351
          %s353 = smul.addr %s29, 128
          %s354 = scalar_lea.hbm %s2, %s353
          %s356 = sshll.u32 %s349, 4
          %s357 = int_to_ptr.vmem [resolvable:$true] %s356
          %359 = dma.hbm_to_vmem [thread:$0]  %s354, 128, %s357, %s346
        $region40: #{tpu_custom_call.1} parent=27 // pred_fallthru
          _
      $region28: #{tpu_custom_call.1} parent=5 // pred_fallthru
        _
      %p360 = scmp.le.s32.totalorder 1, %s29
      %p361 = scmp.lt.s32.totalorder %s29, 3
      %p362 = pnand %p360, %p361
      %p363 = pneg %p362
      // Predicated region
      $region41: #{tpu_custom_call.1} parent=5 // pred_check
        _
      $region42: #{tpu_custom_call.1} parent=5 // pred_check_branch
        %365 = sbr.rel (%p362) target = $region44
      $region43: #{tpu_custom_call.1} parent=5 // pred_region
        %s366 = ssub.s32 %s29, 1
        %s367 = sand.u32 %s42, 1
        %s368 = scalar_lea.sflag [#allocation3], %s367
        %s369 = sand.u32 %s42, 1
        %s370 = smul.addr %s369, 8
        %s371 = scalar_lea.vmem [#allocation2], %s370
        // Predicated region
        $region45: #{tpu_custom_call.1} parent=43 // pred_check
          %p372 = pneg %p55
        $region46: #{tpu_custom_call.1} parent=43 // pred_check_branch
          %374 = sbr.rel (%p372) target = $region48
        $region47: #{tpu_custom_call.1} parent=43 // pred_region
          %375 = dma.done %s368, 128
        $region48: #{tpu_custom_call.1} parent=43 // pred_fallthru
          _
        %s376 = sand.u32 %s34, 1
        %s377 = scalar_lea.sflag [#allocation6], %s376
        %s378 = sand.u32 %s68, 1
        %s379 = smul.addr %s378, 8
        %s380 = scalar_lea.vmem [#allocation5], %s379
        // Predicated region
        $region49: #{tpu_custom_call.1} parent=43 // pred_check
          %p381 = pneg %p81
        $region50: #{tpu_custom_call.1} parent=43 // pred_check_branch
          %383 = sbr.rel (%p381) target = $region52
        $region51: #{tpu_custom_call.1} parent=43 // pred_region
          %384 = dma.done %s377, 128
        $region52: #{tpu_custom_call.1} parent=43 // pred_fallthru
          _
        %s385 = sand.u32 %s34, 1
        %s386 = scalar_lea.sflag [#allocation6], %s385
        %s387 = sand.u32 %s94, 1
        %s388 = smul.addr %s387, 8
        %s389 = scalar_lea.vmem [#allocation7], %s388
        // Predicated region
        $region53: #{tpu_custom_call.1} parent=43 // pred_check
          %p390 = pneg %p107
        $region54: #{tpu_custom_call.1} parent=43 // pred_check_branch
          %392 = sbr.rel (%p390) target = $region56
        $region55: #{tpu_custom_call.1} parent=43 // pred_region
          %393 = dma.done %s386, 128
        $region56: #{tpu_custom_call.1} parent=43 // pred_fallthru
          _
        // Predicated region
        $region57: #{tpu_custom_call.1} parent=43 // pred_check
          %p394 = pneg %p128
        $region58: #{tpu_custom_call.1} parent=43 // pred_check_branch
          %396 = sbr.rel (%p394) target = $region60
        $region59: #{tpu_custom_call.1} parent=43 // pred_region
          %397 = dma.done [#allocation9], 256
        $region60: #{tpu_custom_call.1} parent=43 // pred_fallthru
          _
        // Predicated region
        $region61: #{tpu_custom_call.1} parent=43 // pred_check
          %p398 = pneg %p149
        $region62: #{tpu_custom_call.1} parent=43 // pred_check_branch
          %400 = sbr.rel (%p398) target = $region64
        $region63: #{tpu_custom_call.1} parent=43 // pred_region
          %401 = dma.done [#allocation9], 256
        $region64: #{tpu_custom_call.1} parent=43 // pred_fallthru
          _
        // Predicated region
        $region65: #{tpu_custom_call.1} parent=43 // pred_check
          %p402 = pneg %p170
        $region66: #{tpu_custom_call.1} parent=43 // pred_check_branch
          %404 = sbr.rel (%p402) target = $region68
        $region67: #{tpu_custom_call.1} parent=43 // pred_region
          %405 = dma.done [#allocation12], 256
        $region68: #{tpu_custom_call.1} parent=43 // pred_fallthru
          _
        %s406 = sand.u32 %s42, 1
        %s407 = scalar_lea.sflag [#allocation3], %s406
        %s408 = sand.u32 %s42, 1
        %s409 = smul.addr %s408, 8
        %s410 = scalar_lea.vmem [#allocation2], %s409
        %p411 = pneg %p55
        %p412 = pneg %p52
        %s413 = sand.u32 %s34, 1
        %s414 = scalar_lea.sflag [#allocation6], %s413
        %s415 = sand.u32 %s68, 1
        %s416 = smul.addr %s415, 8
        %s417 = scalar_lea.vmem [#allocation5], %s416
        %p418 = pneg %p81
        %p419 = pneg %p78
        %s420 = sand.u32 %s34, 1
        %s421 = scalar_lea.sflag [#allocation6], %s420
        %s422 = sand.u32 %s94, 1
        %s423 = smul.addr %s422, 8
        %s424 = scalar_lea.vmem [#allocation7], %s423
        %p425 = pneg %p107
        %p426 = pneg %p104
        %p427 = pneg %p128
        %p428 = pneg %p125
        %p429 = pneg %p149
        %p430 = pneg %p146
        %p431 = pneg %p170
        %p432 = pneg %p167
        %p433 = pneg %p196
        %p434 = pneg %p193
        %s435 = sand.u32 %s183, 1
        %s436 = scalar_lea.sflag [#allocation4], %s435
        %s437 = sand.u32 %s183, 1
        %s438 = smul.addr %s437, 4
        %s439 = scalar_lea.vmem [#allocation13], %s438
        %p440 = pneg %p222
        %p441 = pneg %p219
        %s442 = sand.u32 %s34, 1
        %s443 = scalar_lea.sflag [#allocation15], %s442
        %s444 = sand.u32 %s209, 1
        %s445 = smul.addr %s444, 4
        %s446 = scalar_lea.vmem [#allocation14], %s445
        %p447 = pneg %p248
        %p448 = pneg %p245
        %s449 = sand.u32 %s34, 1
        %s450 = scalar_lea.sflag [#allocation15], %s449
        %s451 = sand.u32 %s235, 1
        %s452 = smul.addr %s451, 4
        %s453 = scalar_lea.vmem [#allocation16], %s452
        %v455 = vld [vmem:[%s371] sm:$0xff]
        %v456 = vpack.c.bf16 %v455, %v455
        %v457 = vld [vmem:[#allocation8] sm:$0xf]
        %v458 = vld [vmem:[#allocation8 + $0x4] sm:$0xf]
        %v459 = vld [vmem:[#allocation8 + $0x8] sm:$0xf]
        %v460 = vld [vmem:[#allocation8 + $0xc] sm:$0xf]
        %v465 = vunpack.c.l.b16 %v457
        %v466 = vunpack.c.l.b16 %v458
        %v467 = vunpack.c.l.b16 %v459
        %v468 = vunpack.c.l.b16 %v460
        %v469 = vpack.c.b16 %v466, %v465
        %v470 = vpack.c.b16 %v468, %v467
        %vm471 = vcmask 261120
        %v473 = vsel %vm471, %v456, 0
        %v476 = vsel %vm471, %v469, 0
        %v479 = vsel %vm471, %v470, 0
        %481 = vmatprep.subr.bf16.mxu0 0
        %482 = vmatpush1.bf16.xpose.msra.mxu0 0
        %483 = vmatprep.subr.bf16.mxu0 0
        %484 = vmatpush1.bf16.xpose.msra.mxu0 0
        %485 = vmatprep.subr.bf16.mxu0 0
        %486 = vmatpush1.bf16.xpose.msra.mxu0 0
        %487 = vmatprep.subr.bf16.mxu0 0
        %488 = vmatpush1.bf16.xpose.msra.mxu0 0
        %489 = vmatprep.subr.bf16.mxu0 0
        %490 = vmatpush1.bf16.xpose.msra.mxu0 0
        %491 = vmatprep.subr.bf16.mxu0 0
        %492 = vmatpush1.bf16.xpose.msra.mxu0 0
        %493 = vmatprep.subr.bf16.mxu0 0
        %494 = vmatpush1.bf16.xpose.msra.mxu0 %v479
        %495 = vmatprep.subr.bf16.mxu0 0
        %496 = vmatpush1.bf16.xpose.msra.mxu0 %v476
        %497 = vmatprep.subr.bf16.mxu0 0
        %498 = vmatpush2.bf16.xpose.msra.mxu0 0
        %499 = vmatprep.subr.bf16.mxu0 0
        %500 = vmatpush2.bf16.xpose.msra.mxu0 0
        %501 = vmatprep.subr.bf16.mxu0 0
        %502 = vmatpush2.bf16.xpose.msra.mxu0 0
        %503 = vmatprep.subr.bf16.mxu0 0
        %504 = vmatpush2.bf16.xpose.msra.mxu0 0
        %505 = vmatprep.subr.bf16.mxu0 0
        %506 = vmatpush2.bf16.xpose.msra.mxu0 0
        %507 = vmatprep.subr.bf16.mxu0 0
        %508 = vmatpush2.bf16.xpose.msra.mxu0 0
        %509 = vmatprep.subr.bf16.mxu0 0
        %510 = vmatpush2.bf16.xpose.msra.mxu0 0
        %511 = vmatprep.subr.bf16.mxu0 0
        %512 = vmatpush2.bf16.xpose.msra.mxu0 0
        %513 = vmatprep.mubr.bf16.mxu0 0
        %514 = vmatmul.mubr.bf16.gmra.mxu0 %v473
        %v515 = vpop.f32.mrf.mxu0
        %v516 = vadd.f32 0.0, %v515
        %v517 = vpop.f32.mrf.mxu0
        %v518 = vpop.f32.mrf.mxu0
        %v519 = vpop.f32.mrf.mxu0
        %520 = vdwg.mxu0
        %v521 = vmul.f32 %v516, 0.35355338
        %v522 = vpack.c.bf16 %v521, %v521
        %vm523 = vcmask 257024
        %524 = vst.msk [vmem:[%s439] sm:$0xf] %vm523, %v522
        %v525 = vld [vmem:[%s380] sm:$0xff]
        %v526 = vpack.c.bf16 %v525, %v525
        %v527 = vld [vmem:[#allocation10] sm:$0xf]
        %v528 = vld [vmem:[#allocation10 + $0x4] sm:$0xf]
        %v529 = vld [vmem:[#allocation10 + $0x8] sm:$0xf]
        %v530 = vld [vmem:[#allocation10 + $0xc] sm:$0xf]
        %v535 = vunpack.c.l.b16 %v527
        %v536 = vunpack.c.l.b16 %v528
        %v537 = vunpack.c.l.b16 %v529
        %v538 = vunpack.c.l.b16 %v530
        %v539 = vpack.c.b16 %v536, %v535
        %v540 = vpack.c.b16 %v538, %v537
        %v542 = vsel %vm471, %v526, 0
        %v545 = vsel %vm471, %v539, 0
        %v548 = vsel %vm471, %v540, 0
        %550 = vmatprep.subr.bf16.mxu0 0
        %551 = vmatpush1.bf16.xpose.msra.mxu0 0
        %552 = vmatprep.subr.bf16.mxu0 0
        %553 = vmatpush1.bf16.xpose.msra.mxu0 0
        %554 = vmatprep.subr.bf16.mxu0 0
        %555 = vmatpush1.bf16.xpose.msra.mxu0 0
        %556 = vmatprep.subr.bf16.mxu0 0
        %557 = vmatpush1.bf16.xpose.msra.mxu0 0
        %558 = vmatprep.subr.bf16.mxu0 0
        %559 = vmatpush1.bf16.xpose.msra.mxu0 0
        %560 = vmatprep.subr.bf16.mxu0 0
        %561 = vmatpush1.bf16.xpose.msra.mxu0 0
        %562 = vmatprep.subr.bf16.mxu0 0
        %563 = vmatpush1.bf16.xpose.msra.mxu0 %v548
        %564 = vmatprep.subr.bf16.mxu0 0
        %565 = vmatpush1.bf16.xpose.msra.mxu0 %v545
        %566 = vmatprep.subr.bf16.mxu0 0
        %567 = vmatpush2.bf16.xpose.msra.mxu0 0
        %568 = vmatprep.subr.bf16.mxu0 0
        %569 = vmatpush2.bf16.xpose.msra.mxu0 0
        %570 = vmatprep.subr.bf16.mxu0 0
        %571 = vmatpush2.bf16.xpose.msra.mxu0 0
        %572 = vmatprep.subr.bf16.mxu0 0
        %573 = vmatpush2.bf16.xpose.msra.mxu0 0
        %574 = vmatprep.subr.bf16.mxu0 0
        %575 = vmatpush2.bf16.xpose.msra.mxu0 0
        %576 = vmatprep.subr.bf16.mxu0 0
        %577 = vmatpush2.bf16.xpose.msra.mxu0 0
        %578 = vmatprep.subr.bf16.mxu0 0
        %579 = vmatpush2.bf16.xpose.msra.mxu0 0
        %580 = vmatprep.subr.bf16.mxu0 0
        %581 = vmatpush2.bf16.xpose.msra.mxu0 0
        %582 = vmatprep.mubr.bf16.mxu0 0
        %583 = vmatmul.mubr.bf16.gmra.mxu0 %v542
        %v584 = vpop.f32.mrf.mxu0
        %v585 = vadd.f32 0.0, %v584
        %v586 = vpop.f32.mrf.mxu0
        %v587 = vpop.f32.mrf.mxu0
        %v588 = vpop.f32.mrf.mxu0
        %589 = vdwg.mxu0
        %v590 = vpack.c.bf16 %v585, %v585
        %591 = vst.msk [vmem:[%s446] sm:$0xf] %vm523, %v590
        %v592 = vld [vmem:[%s389] sm:$0xff]
        %v593 = vpack.c.bf16 %v592, %v592
        %v594 = vld [vmem:[#allocation11] sm:$0xf]
        %v595 = vld [vmem:[#allocation11 + $0x4] sm:$0xf]
        %v596 = vld [vmem:[#allocation11 + $0x8] sm:$0xf]
        %v597 = vld [vmem:[#allocation11 + $0xc] sm:$0xf]
        %v602 = vunpack.c.l.b16 %v594
        %v603 = vunpack.c.l.b16 %v595
        %v604 = vunpack.c.l.b16 %v596
        %v605 = vunpack.c.l.b16 %v597
        %v606 = vpack.c.b16 %v603, %v602
        %v607 = vpack.c.b16 %v605, %v604
        %v609 = vsel %vm471, %v593, 0
        %v612 = vsel %vm471, %v606, 0
        %v615 = vsel %vm471, %v607, 0
        %617 = vmatprep.subr.bf16.mxu0 0
        %618 = vmatpush1.bf16.xpose.msra.mxu0 0
        %619 = vmatprep.subr.bf16.mxu0 0
        %620 = vmatpush1.bf16.xpose.msra.mxu0 0
        %621 = vmatprep.subr.bf16.mxu0 0
        %622 = vmatpush1.bf16.xpose.msra.mxu0 0
        %623 = vmatprep.subr.bf16.mxu0 0
        %624 = vmatpush1.bf16.xpose.msra.mxu0 0
        %625 = vmatprep.subr.bf16.mxu0 0
        %626 = vmatpush1.bf16.xpose.msra.mxu0 0
        %627 = vmatprep.subr.bf16.mxu0 0
        %628 = vmatpush1.bf16.xpose.msra.mxu0 0
        %629 = vmatprep.subr.bf16.mxu0 0
        %630 = vmatpush1.bf16.xpose.msra.mxu0 %v615
        %631 = vmatprep.subr.bf16.mxu0 0
        %632 = vmatpush1.bf16.xpose.msra.mxu0 %v612
        %633 = vmatprep.subr.bf16.mxu0 0
        %634 = vmatpush2.bf16.xpose.msra.mxu0 0
        %635 = vmatprep.subr.bf16.mxu0 0
        %636 = vmatpush2.bf16.xpose.msra.mxu0 0
        %637 = vmatprep.subr.bf16.mxu0 0
        %638 = vmatpush2.bf16.xpose.msra.mxu0 0
        %639 = vmatprep.subr.bf16.mxu0 0
        %640 = vmatpush2.bf16.xpose.msra.mxu0 0
        %641 = vmatprep.subr.bf16.mxu0 0
        %642 = vmatpush2.bf16.xpose.msra.mxu0 0
        %643 = vmatprep.subr.bf16.mxu0 0
        %644 = vmatpush2.bf16.xpose.msra.mxu0 0
        %645 = vmatprep.subr.bf16.mxu0 0
        %646 = vmatpush2.bf16.xpose.msra.mxu0 0
        %647 = vmatprep.subr.bf16.mxu0 0
        %648 = vmatpush2.bf16.xpose.msra.mxu0 0
        %649 = vmatprep.mubr.bf16.mxu0 0
        %650 = vmatmul.mubr.bf16.gmra.mxu0 %v609
        %v651 = vpop.f32.mrf.mxu0
        %v652 = vadd.f32 0.0, %v651
        %v653 = vpop.f32.mrf.mxu0
        %v654 = vpop.f32.mrf.mxu0
        %v655 = vpop.f32.mrf.mxu0
        %656 = vdwg.mxu0
        %v657 = vpack.c.bf16 %v652, %v652
        %658 = vst.msk [vmem:[%s453] sm:$0xf] %vm523, %v657
        %s659 = sand.u32 %s183, 1
        %s660 = scalar_lea.sflag [#allocation4], %s659
        %s661 = sand.u32 %s183, 1
        %s662 = smul.addr %s661, 4
        %s663 = scalar_lea.vmem [#allocation13], %s662
        %s664 = sand.u32 %s34, 1
        %s665 = scalar_lea.sflag [#allocation15], %s664
        %s666 = sand.u32 %s209, 1
        %s667 = smul.addr %s666, 4
        %s668 = scalar_lea.vmem [#allocation14], %s667
        %s669 = sand.u32 %s34, 1
        %s670 = scalar_lea.sflag [#allocation15], %s669
        %s671 = sand.u32 %s235, 1
        %s672 = smul.addr %s671, 4
        %s673 = scalar_lea.vmem [#allocation16], %s672
        // Predicated region
        $region69: #{tpu_custom_call.1} parent=43 // pred_check
          %p674 = pneg %p193
        $region70: #{tpu_custom_call.1} parent=43 // pred_check_branch
          %676 = sbr.rel (%p674) target = $region72
        $region71: #{tpu_custom_call.1} parent=43 // pred_region
          %s678 = ssub.s32 64, 64
          %679 = vsyncadd %s660, %s678
          %s680 = smul.addr %s34, 64
          %s681 = scalar_lea.hbm %s6, %s680
          %s683 = sshll.u32 %s663, 4
          %s684 = int_to_ptr.vmem [resolvable:$true] %s683
          %686 = dma.vmem_to_hbm [thread:$0]  %s684, 64, %s681, %s660
        $region72: #{tpu_custom_call.1} parent=43 // pred_fallthru
          _
        // Predicated region
        $region73: #{tpu_custom_call.1} parent=43 // pred_check
          %p687 = pneg %p219
        $region74: #{tpu_custom_call.1} parent=43 // pred_check_branch
          %689 = sbr.rel (%p687) target = $region76
        $region75: #{tpu_custom_call.1} parent=43 // pred_region
          %s691 = ssub.s32 64, 64
          %692 = vsyncadd %s665, %s691
          %s693 = smul.addr %s34, 64
          %s694 = scalar_lea.hbm %s7, %s693
          %s696 = sshll.u32 %s668, 4
          %s697 = int_to_ptr.vmem [resolvable:$true] %s696
          %699 = dma.vmem_to_hbm [thread:$0]  %s697, 64, %s694, %s665
        $region76: #{tpu_custom_call.1} parent=43 // pred_fallthru
          _
        // Predicated region
        $region77: #{tpu_custom_call.1} parent=43 // pred_check
          %p700 = pneg %p245
        $region78: #{tpu_custom_call.1} parent=43 // pred_check_branch
          %702 = sbr.rel (%p700) target = $region80
        $region79: #{tpu_custom_call.1} parent=43 // pred_region
          %s704 = ssub.s32 64, 64
          %705 = vsyncadd %s670, %s704
          %s706 = smul.addr %s34, 64
          %s707 = scalar_lea.hbm %s8, %s706
          %s709 = sshll.u32 %s673, 4
          %s710 = int_to_ptr.vmem [resolvable:$true] %s709
          %712 = dma.vmem_to_hbm [thread:$0]  %s710, 64, %s707, %s670
        $region80: #{tpu_custom_call.1} parent=43 // pred_fallthru
          _
      $region44: #{tpu_custom_call.1} parent=5 // pred_fallthru
        _
      %p713 = scmp.le.s32.totalorder 2, %s29
      // Predicated region
      $region81: #{tpu_custom_call.1} parent=5 // pred_check
        %p714 = pneg %p713
      $region82: #{tpu_custom_call.1} parent=5 // pred_check_branch
        %716 = sbr.rel (%p714) target = $region84
      $region83: #{tpu_custom_call.1} parent=5 // pred_region
        %s717 = ssub.s32 %s29, 2
        // Predicated region
        $region85: #{tpu_custom_call.1} parent=83 // pred_check
          %p718 = pneg %p199
        $region86: #{tpu_custom_call.1} parent=83 // pred_check_branch
          %720 = sbr.rel (%p718) target = $region88
        $region87: #{tpu_custom_call.1} parent=83 // pred_region
          %s721 = sand.u32 %s184, 1
          %s722 = scalar_lea.sflag [#allocation4], %s721
          %s723 = sand.u32 %s184, 1
          %s724 = smul.addr %s723, 4
          %s725 = scalar_lea.vmem [#allocation13], %s724
          %726 = dma.done %s722, 64
        $region88: #{tpu_custom_call.1} parent=83 // pred_fallthru
          _
        // Predicated region
        $region89: #{tpu_custom_call.1} parent=83 // pred_check
          %p727 = pneg %p225
        $region90: #{tpu_custom_call.1} parent=83 // pred_check_branch
          %729 = sbr.rel (%p727) target = $region92
        $region91: #{tpu_custom_call.1} parent=83 // pred_region
          %s730 = sand.u32 %s35, 1
          %s731 = scalar_lea.sflag [#allocation15], %s730
          %s732 = sand.u32 %s210, 1
          %s733 = smul.addr %s732, 4
          %s734 = scalar_lea.vmem [#allocation14], %s733
          %735 = dma.done %s731, 64
        $region92: #{tpu_custom_call.1} parent=83 // pred_fallthru
          _
        // Predicated region
        $region93: #{tpu_custom_call.1} parent=83 // pred_check
          %p736 = pneg %p251
        $region94: #{tpu_custom_call.1} parent=83 // pred_check_branch
          %738 = sbr.rel (%p736) target = $region96
        $region95: #{tpu_custom_call.1} parent=83 // pred_region
          %s739 = sand.u32 %s35, 1
          %s740 = scalar_lea.sflag [#allocation15], %s739
          %s741 = sand.u32 %s236, 1
          %s742 = smul.addr %s741, 4
          %s743 = scalar_lea.vmem [#allocation16], %s742
          %744 = dma.done %s740, 64
        $region96: #{tpu_custom_call.1} parent=83 // pred_fallthru
          _
      $region84: #{tpu_custom_call.1} parent=5 // pred_fallthru
        _
    $region6: #{tpu_custom_call.1} parent=1 // loop_footer
      %s33 = sadd.s32 1, %s29
    $region7: #{tpu_custom_call.1} parent=1 // loop_footer_branch
      %28 = sbr.rel target = $region3
    $region8: #{tpu_custom_call.1} parent=1 // loop_exit
      _
    %745 = vsyncpa [#allocation3], 1
    %s746 = scalar_lea.sflag [#allocation3], 1
    %747 = vsyncpa %s746, 1
    %748 = vsyncpa [#allocation6], 1
    %s749 = scalar_lea.sflag [#allocation6], 1
    %750 = vsyncpa %s749, 1
    %751 = vsyncpa [#allocation9], 1
    %752 = vsyncpa [#allocation12], 1
    %753 = vsyncpa [#allocation4], 1
    %s754 = scalar_lea.sflag [#allocation4], 1
    %755 = vsyncpa %s754, 1
    %756 = vsyncpa [#allocation15], 1
    %s757 = scalar_lea.sflag [#allocation15], 1
    %758 = vsyncpa %s757, 1

</llo_original>
